<compile_context>
chip_gen: v7x
topology: tpu7x:2x2x1
jax: 0.10.0
libtpu: 0.0.40
codegen_flags: <defaults>
</compile_context>

<pallas_src>
import jax
import jax.numpy as jnp
import numpy as np
from jax.experimental import pallas as pl
from jax.experimental.pallas import tpu as pltpu

# ----------------------------- config (small test shapes) -----------------------------
BATCH = 8                          # multiple of 8 -> sublane aligned
NOISE_SIZE = 10
HIDDEN = 32                        # module default is 100; small for the test
HIDDEN_SIZES = [HIDDEN] * 4
OUTPUT_SIZE = [1] * 9              # 9 variables, one category each -> d = 9
D = sum(OUTPUT_SIZE)
PAD = 128                          # lane-dense padding for the d-sized axis
BN_EPS = 1e-5

_VMEM = pl.BlockSpec(memory_space=pltpu.MemorySpace.VMEM)

# Row layout of the packed (16, 128) vector slab.
_ROW_B1 = 0
_ROW_B2, _ROW_G2, _ROW_BE2 = 1, 2, 3
_ROW_B3, _ROW_G3, _ROW_BE3 = 4, 5, 6
_ROW_B4, _ROW_G4, _ROW_BE4 = 7, 8, 9
_ROW_BOUT = 10
_ROW_WAOFF = 11
_N_ROWS = 16                       # pad rows to a multiple of 8 (sublane tile)


# ----------------------------- kernel -----------------------------
def _lgn_forward_kernel(noise_ref, w1_ref, w234_ref, wout_ref, vec_ref, mt_ref, out_ref):
    x = noise_ref[...]

    # ---- hidden layer 0: Linear + ReLU ----
    h = jnp.dot(x, w1_ref[...], preferred_element_type=jnp.float32)
    h = jnp.maximum(h + vec_ref[_ROW_B1:_ROW_B1 + 1, :HIDDEN], 0.0)

    # ---- hidden layers 1..3: Linear + BatchNorm1d (training batch stats) + ReLU ----
    def lin_bn_relu(h, w, b, g, be):
        z = jnp.dot(h, w, preferred_element_type=jnp.float32) + b
        mu = jnp.mean(z, axis=0, keepdims=True)
        # one-pass biased variance E[z^2] - mu^2 (clamped against rounding)
        var = jnp.maximum(jnp.mean(z * z, axis=0, keepdims=True) - mu * mu, 0.0)
        zn = (z - mu) * jax.lax.rsqrt(var + BN_EPS)
        return jnp.maximum(zn * g + be, 0.0)

    bn_rows = ((_ROW_B2, _ROW_G2, _ROW_BE2),
               (_ROW_B3, _ROW_G3, _ROW_BE3),
               (_ROW_B4, _ROW_G4, _ROW_BE4))
    for layer, (rb, rg, rbe) in enumerate(bn_rows):
        h = lin_bn_relu(
            h,
            w234_ref[layer, :, :],
            vec_ref[rb:rb + 1, :HIDDEN],
            vec_ref[rg:rg + 1, :HIDDEN],
            vec_ref[rbe:rbe + 1, :HIDDEN],
        )

    # ---- MultiCategorical head: per-variable Linear(hidden, 1) + softmax over each
    #      size-1 category group.  Softmax of a single logit is exactly 1, so the
    #      probabilities are independent of the logits.  The logits computation is
    #      kept for structural fidelity; the compiler may dead-code it. ----
    logits = (jnp.dot(h, wout_ref[...], preferred_element_type=jnp.float32)
              + vec_ref[_ROW_BOUT:_ROW_BOUT + 1, :])
    probs = jnp.ones_like(logits)                       # exact size-1-group softmax

    # ---- final = M @ (probs + Wa) - Wa  ==  probs @ M^T + (Wa * M@1 - Wa)
    #      mt_ref holds M^T zero-padded to (PAD, PAD): padded lanes of probs are inert
    #      and padded output columns come out as the (zero-padded) Wa offset. ----
    final = (jnp.dot(probs, mt_ref[...], preferred_element_type=jnp.float32)
             + vec_ref[_ROW_WAOFF:_ROW_WAOFF + 1, :])

    # lane-dense full-width stores into the packed (2, B, 128) output slab
    out_ref[0, :, :] = final
    out_ref[1, :, :] = probs


# ----------------------------- wrapper -----------------------------
def _pack_params(params, m):
    """Pack row-vector params + folded Wa offset into one (16,128) slab; stack w2..w4;
    zero-pad wout and M^T to 128 lanes."""
    wa = params["wa"][0]
    vecs = jnp.zeros((_N_ROWS, PAD), jnp.float32)
    rows = [
        (_ROW_B1, params["b1"]),
        (_ROW_B2, params["b2"]), (_ROW_G2, params["g2"]), (_ROW_BE2, params["be2"]),
        (_ROW_B3, params["b3"]), (_ROW_G3, params["g3"]), (_ROW_BE3, params["be3"]),
        (_ROW_B4, params["b4"]), (_ROW_G4, params["g4"]), (_ROW_BE4, params["be4"]),
        (_ROW_BOUT, params["bout"]),
    ]
    for r, v in rows:
        v = jnp.ravel(v).astype(jnp.float32)
        vecs = vecs.at[r, : v.shape[0]].set(v)

    # Fold Wa:  M @ (p + Wa) - Wa  ==  p @ M^T + (Wa * rowsum(M) - Wa)
    wa_off = wa * jnp.sum(m, axis=1) - wa                                   # (D,)
    vecs = vecs.at[_ROW_WAOFF, :D].set(wa_off.astype(jnp.float32))

    w234 = jnp.stack([params["w2"], params["w3"], params["w4"]], axis=0)    # (3,H,H)
    wout_pad = jnp.zeros((HIDDEN, PAD), jnp.float32).at[:, :D].set(params["wout"])
    mt_pad = jnp.zeros((PAD, PAD), jnp.float32).at[:D, :D].set(m.T)
    return vecs, w234, wout_pad, mt_pad


def lgn_forward(noise, params):
    """Full forward pass. Returns (final_output, adj_A1, output_10, Wa)."""
    # adj_A1 = sinh(3 * adj_A): tiny 9x9 elementwise op -> plain jnp (fused by XLA),
    # no separate Pallas launch.
    adj_A1 = jnp.sinh(3.0 * params["adj_A"])

    # preprocess_adj_new1: inv(I - adj_A1^T)
    # TODO(synk): dense matrix inverse has no clean Pallas TPU primitive; kept in
    #             plain JAX (PyTorch runs this path in float64, float32 used here).
    m = jnp.linalg.inv(jnp.eye(D, dtype=jnp.float32) - adj_A1.T)

    vecs, w234, wout_pad, mt_pad = _pack_params(params, m)

    batch = noise.shape[0]
    flops = 2 * batch * (NOISE_SIZE * HIDDEN + 3 * HIDDEN * HIDDEN
                         + HIDDEN * PAD + PAD * PAD)
    bytes_accessed = 4 * (noise.size + params["w1"].size + w234.size + wout_pad.size
                          + vecs.size + mt_pad.size + 2 * batch * PAD)

    packed = pl.pallas_call(
        _lgn_forward_kernel,
        out_shape=jax.ShapeDtypeStruct((2, batch, PAD), jnp.float32),
        in_specs=[_VMEM] * 6,
        out_specs=_VMEM,
        cost_estimate=pl.CostEstimate(
            flops=int(flops),
            transcendentals=3 * HIDDEN,          # BN rsqrt per column per layer
            bytes_accessed=int(bytes_accessed)),
    )(noise, params["w1"], w234, wout_pad, vecs, mt_pad)

    final_output = packed[0, :, :D]
    output_10 = packed[1, :, :D]
    return final_output, adj_A1, output_10, params["wa"]


# ----------------------------- deterministic parameter init -----------------------------
def init_params(key):
    ks = jax.random.split(key, 16)
    p = {}

    def linear(kw, kb, fan_in, fan_out):
        bound = 1.0 / np.sqrt(fan_in)
        w = jax.random.uniform(kw, (fan_in, fan_out), jnp.float32, -bound, bound)
        b = jax.random.uniform(kb, (1, fan_out), jnp.float32, -bound, bound)
        return w, b

    sizes = [NOISE_SIZE] + HIDDEN_SIZES
    p["w1"], p["b1"] = linear(ks[0], ks[1], sizes[0], sizes[1])
    p["w2"], p["b2"] = linear(ks[2], ks[3], sizes[1], sizes[2])
    p["w3"], p["b3"] = linear(ks[4], ks[5], sizes[2], sizes[3])
    p["w4"], p["b4"] = linear(ks[6], ks[7], sizes[3], sizes[4])
    # BatchNorm affine params (gamma=1, beta=0, as nn.BatchNorm1d init)
    for i, h in zip((2, 3, 4), HIDDEN_SIZES[1:]):
        p[f"g{i}"] = jnp.ones((1, h), jnp.float32)
        p[f"be{i}"] = jnp.zeros((1, h), jnp.float32)
    # MultiCategorical: one Linear(hidden, 1) per variable, concatenated -> (hidden, D)
    p["wout"], p["bout"] = linear(ks[8], ks[9], HIDDEN_SIZES[-1], D)
    # adj_A parameter (module receives it as an input array; random deterministic here)
    p["adj_A"] = 0.1 * jax.random.normal(ks[10], (D, D), jnp.float32)
    # Wa parameter: zeros(1), as in __init__
    p["wa"] = jnp.zeros((1,), jnp.float32)
    return p


# ----------------------------- numpy reference (for self-check) -----------------------------
def ref_forward(noise, p):
    adj_A1 = np.sinh(3.0 * np.asarray(p["adj_A"], np.float64))
    m = np.linalg.inv(np.eye(D) - adj_A1.T)

    h = np.maximum(np.asarray(noise) @ np.asarray(p["w1"]) + np.asarray(p["b1"]), 0.0)
    for i in (2, 3, 4):
        z = h @ np.asarray(p[f"w{i}"]) + np.asarray(p[f"b{i}"])
        mu = z.mean(0, keepdims=True)
        var = z.var(0, keepdims=True)
        zn = (z - mu) / np.sqrt(var + BN_EPS)
        h = np.maximum(zn * np.asarray(p[f"g{i}"]) + np.asarray(p[f"be{i}"]), 0.0)
    logits = h @ np.asarray(p["wout"]) + np.asarray(p["bout"])
    probs = np.ones_like(logits)                     # softmax over size-1 groups
    wa = float(p["wa"][0])
    final = (probs + wa) @ m.T - wa
    return final.astype(np.float32), adj_A1.astype(np.float32), probs.astype(np.float32)


# ----------------------------- main -----------------------------
if __name__ == "__main__":
    key = jax.random.PRNGKey(0)
    k_noise, k_params = jax.random.split(key)
    params = init_params(k_params)
    noise = jax.random.normal(k_noise, (BATCH, NOISE_SIZE), jnp.float32)

    final_output, adj_A1, output_10, wa = lgn_forward(noise, params)
    jax.block_until_ready((final_output, adj_A1, output_10, wa))

    ref_final, ref_adj_A1, ref_probs = ref_forward(noise, params)
    assert final_output.shape == (BATCH, D)
    assert output_10.shape == (BATCH, D)
    assert adj_A1.shape == (D, D)
    np.testing.assert_allclose(np.asarray(adj_A1), ref_adj_A1, rtol=1e-4, atol=1e-5)
    np.testing.assert_allclose(np.asarray(output_10), ref_probs, rtol=1e-5, atol=1e-6)
    np.testing.assert_allclose(np.asarray(final_output), ref_final, rtol=1e-3, atol=1e-4)

    print("KERNEL_OK")
</pallas_src>

<mosaic_0001>
module attributes {stable_mosaic.version = 11 : i64} {
  func.func @_lgn_forward_kernel(%arg0: memref<8x10xf32, #tpu.memory_space<vmem>>, %arg1: memref<10x32xf32, #tpu.memory_space<vmem>>, %arg2: memref<3x32x32xf32, #tpu.memory_space<vmem>>, %arg3: memref<32x128xf32, #tpu.memory_space<vmem>>, %arg4: memref<16x128xf32, #tpu.memory_space<vmem>>, %arg5: memref<128x128xf32, #tpu.memory_space<vmem>>, %arg6: memref<2x8x128xf32, #tpu.memory_space<vmem>>) attributes {dimension_semantics = [], scalar_prefetch = 0 : i64, scratch_operands = 0 : i64, tpu.core_type = #tpu.core_type<tc>} {
    %cst = arith.constant 1.000000e+00 : f32
    %0 = vector.broadcast %cst : f32 to vector<8x128xf32>
    %c0 = arith.constant 0 : index
    %c0_0 = arith.constant 0 : index
    %1 = vector.load %arg5[%c0, %c0_0] : memref<128x128xf32, #tpu.memory_space<vmem>>, vector<128x128xf32>
    %cst_1 = arith.constant dense<0.000000e+00> : vector<8x128xf32>
    %2 = tpu.matmul %0, %1, %cst_1 {dimension_numbers = #tpu.dot_dimension_numbers<[1], [0], [0], [1], [0, 0, 1, 1], [], []>} : vector<8x128xf32>, vector<128x128xf32>, vector<8x128xf32> -> vector<8x128xf32>
    %c11 = arith.constant 11 : index
    %c0_2 = arith.constant 0 : index
    %3 = vector.load %arg4[%c11, %c0_2] : memref<16x128xf32, #tpu.memory_space<vmem>>, vector<1x128xf32>
    %4 = vector.broadcast %3 : vector<1x128xf32> to vector<8x128xf32>
    %5 = arith.addf %2, %4 : vector<8x128xf32>
    %c0_3 = arith.constant 0 : index
    %c0_4 = arith.constant 0 : index
    %c0_5 = arith.constant 0 : index
    %6 = vector.load %arg6[%c0_3, %c0_4, %c0_5] : memref<2x8x128xf32, #tpu.memory_space<vmem>>, vector<1x8x128xf32>
    %7 = vector.shape_cast %6 : vector<1x8x128xf32> to vector<8x128xf32>
    %8 = vector.shape_cast %5 : vector<8x128xf32> to vector<1x8x128xf32>
    tpu.vector_store %arg6[%c0_3, %c0_4, %c0_5], %8 {strides = array<i32>} : memref<2x8x128xf32, #tpu.memory_space<vmem>>, vector<1x8x128xf32>,
    %c1 = arith.constant 1 : index
    %c0_6 = arith.constant 0 : index
    %c0_7 = arith.constant 0 : index
    %9 = vector.load %arg6[%c1, %c0_6, %c0_7] : memref<2x8x128xf32, #tpu.memory_space<vmem>>, vector<1x8x128xf32>
    %10 = vector.shape_cast %9 : vector<1x8x128xf32> to vector<8x128xf32>
    %11 = vector.shape_cast %0 : vector<8x128xf32> to vector<1x8x128xf32>
    tpu.vector_store %arg6[%c1, %c0_6, %c0_7], %11 {strides = array<i32>} : memref<2x8x128xf32, #tpu.memory_space<vmem>>, vector<1x8x128xf32>,
    return
  }
}

</mosaic_0001>

<llo_original>
// kernel: tpu_custom_call.1
$region0: #{tpu_custom_call.1}
  #allocation0 [shape = 'u32[]', space=smem, size = 0x4, offset = 0x4, fixed_abs, tag = 'smem constant byte address 0x4 - core index']
  #allocation1 [shape = 'u32[144,128]{1,0:T(1,128)}', space=vmem, size = 0x12000, scoped, tag = 'internal scratch']
  %s0 = inlined_call_operand.hbm [shape: f32[8,10], index: 0, kind: input, shape index: {}]
  %s1 = inlined_call_operand.hbm [shape: f32[10,32], index: 1, kind: input, shape index: {}]
  %s2 = inlined_call_operand.hbm [shape: f32[3,32,32], index: 2, kind: input, shape index: {}]
  %s3 = inlined_call_operand.hbm [shape: f32[32,128], index: 3, kind: input, shape index: {}]
  %s4 = inlined_call_operand.hbm [shape: f32[16,128], index: 4, kind: input, shape index: {}]
  %s5 = inlined_call_operand.hbm [shape: f32[128,128], index: 5, kind: input, shape index: {}]
  %s6 = inlined_call_operand.hbm [shape: f32[2,8,128], index: 6, kind: output, shape index: {}]
  %s7 = sld [smem:[#allocation0]]
  $region58: #{tpu_custom_call.1} parent=0
    _
  %s9 = ssub.s32 1, %s7
  %s10 = scalar_select 0, %s9, %s7
  $region1: #{tpu_custom_call.1} parent=0
    #allocation2 [shape = 'u8[4096]{0}', space=vmem, size = 0x1000, scoped, tag = 'input window, operand 0, single buffered']
    #allocation3 [shape = 's32[1]{0}', space=sflag, size = 0x4, scoped, tag = 'scoped memory for tpu_custom_call.1']
    #allocation4 [shape = 's32[1]{0}', space=sflag, size = 0x4, scoped, tag = 'scoped memory for tpu_custom_call.1']
    #allocation5 [shape = 'u8[8192]{0}', space=vmem, size = 0x2000, scoped, tag = 'input window, operand 1, single buffered']
    #allocation6 [shape = 's32[1]{0}', space=sflag, size = 0x4, scoped, tag = 'scoped memory for tpu_custom_call.1']
    #allocation7 [shape = 'u8[49152]{0}', space=vmem, size = 0xc000, scoped, tag = 'input window, operand 2, single buffered']
    #allocation8 [shape = 'u8[16384]{0}', space=vmem, size = 0x4000, scoped, tag = 'input window, operand 3, single buffered']
    #allocation9 [shape = 's32[1]{0}', space=sflag, size = 0x4, scoped, tag = 'scoped memory for tpu_custom_call.1']
    #allocation10 [shape = 'u8[8192]{0}', space=vmem, size = 0x2000, scoped, tag = 'input window, operand 4, single buffered']
    #allocation11 [shape = 'u8[65536]{0}', space=vmem, size = 0x10000, scoped, tag = 'input window, operand 5, single buffered']
    #allocation12 [shape = 's32[1]{0}', space=sflag, size = 0x4, scoped, tag = 'scoped memory for tpu_custom_call.1']
    #allocation13 [shape = 'u8[8192]{0}', space=vmem, size = 0x2000, scoped, tag = 'output window, operand 0, single buffered']
    %11 = vsyncpa [#allocation3], 0
    %12 = vsyncpa [#allocation6], 0
    %13 = vsyncpa [#allocation9], 0
    %14 = vsyncpa [#allocation12], 0
    %15 = vsyncpa [#allocation4], 0
    // Predicated region
    $region2: #{tpu_custom_call.1} parent=1 // pred_check
      _
    $region3: #{tpu_custom_call.1} parent=1 // pred_check_branch
      %17 = sbr.rel (0) target = $region5
    $region4: #{tpu_custom_call.1} parent=1 // pred_region
      %s19 = ssub.s32 128, 128
      %20 = vsyncadd [#allocation3], %s19
      %s22 = sshll.u32 [#allocation2], 4
      %s23 = int_to_ptr.vmem [resolvable:$true] %s22
      %25 = dma.hbm_to_vmem [thread:$0]  %s0, 128, %s23, [#allocation3]
    $region5: #{tpu_custom_call.1} parent=1 // pred_fallthru
      _
    // Predicated region
    $region6: #{tpu_custom_call.1} parent=1 // pred_check
      _
    $region7: #{tpu_custom_call.1} parent=1 // pred_check_branch
      %27 = sbr.rel (0) target = $region9
    $region8: #{tpu_custom_call.1} parent=1 // pred_region
      %s29 = ssub.s32 256, 256
      %30 = vsyncadd [#allocation6], %s29
      %s31 = sshll.u32 [#allocation5], 4
      %s32 = int_to_ptr.vmem [resolvable:$true] %s31
      %37 = dma.hbm_to_vmem [thread:$0]  %s1, 256, %s32, [#allocation6], 128, 128, 8
    $region9: #{tpu_custom_call.1} parent=1 // pred_fallthru
      _
    // Predicated region
    $region10: #{tpu_custom_call.1} parent=1 // pred_check
      _
    $region11: #{tpu_custom_call.1} parent=1 // pred_check_branch
      %39 = sbr.rel (0) target = $region13
    $region12: #{tpu_custom_call.1} parent=1 // pred_region
      %s41 = ssub.s32 1536, 1536
      %42 = vsyncadd [#allocation6], %s41
      %s43 = sshll.u32 [#allocation7], 4
      %s44 = int_to_ptr.vmem [resolvable:$true] %s43
      %49 = dma.hbm_to_vmem [thread:$0]  %s2, 1536, %s44, [#allocation6], 128, 128, 8
    $region13: #{tpu_custom_call.1} parent=1 // pred_fallthru
      _
    // Predicated region
    $region14: #{tpu_custom_call.1} parent=1 // pred_check
      _
    $region15: #{tpu_custom_call.1} parent=1 // pred_check_branch
      %51 = sbr.rel (0) target = $region17
    $region16: #{tpu_custom_call.1} parent=1 // pred_region
      %s53 = ssub.s32 512, 512
      %54 = vsyncadd [#allocation9], %s53
      %s55 = sshll.u32 [#allocation8], 4
      %s56 = int_to_ptr.vmem [resolvable:$true] %s55
      %61 = dma.hbm_to_vmem [thread:$0]  %s3, 512, %s56, [#allocation9], 128, 128, 8
    $region17: #{tpu_custom_call.1} parent=1 // pred_fallthru
      _
    // Predicated region
    $region18: #{tpu_custom_call.1} parent=1 // pred_check
      _
    $region19: #{tpu_custom_call.1} parent=1 // pred_check_branch
      %63 = sbr.rel (0) target = $region21
    $region20: #{tpu_custom_call.1} parent=1 // pred_region
      %s65 = ssub.s32 256, 256
      %66 = vsyncadd [#allocation9], %s65
      %s67 = sshll.u32 [#allocation10], 4
      %s68 = int_to_ptr.vmem [resolvable:$true] %s67
      %73 = dma.hbm_to_vmem [thread:$0]  %s4, 256, %s68, [#allocation9], 128, 128, 8
    $region21: #{tpu_custom_call.1} parent=1 // pred_fallthru
      _
    // Predicated region
    $region22: #{tpu_custom_call.1} parent=1 // pred_check
      _
    $region23: #{tpu_custom_call.1} parent=1 // pred_check_branch
      %75 = sbr.rel (0) target = $region25
    $region24: #{tpu_custom_call.1} parent=1 // pred_region
      %s77 = ssub.s32 2048, 2048
      %78 = vsyncadd [#allocation12], %s77
      %s79 = sshll.u32 [#allocation11], 4
      %s80 = int_to_ptr.vmem [resolvable:$true] %s79
      %85 = dma.hbm_to_vmem [thread:$0]  %s5, 2048, %s80, [#allocation12], 128, 128, 8
    $region25: #{tpu_custom_call.1} parent=1 // pred_fallthru
      _
    // Predicated region
    $region26: #{tpu_custom_call.1} parent=1 // pred_check
      _
    $region27: #{tpu_custom_call.1} parent=1 // pred_check_branch
      %87 = sbr.rel (0) target = $region29
    $region28: #{tpu_custom_call.1} parent=1 // pred_region
      %88 = dma.done [#allocation3], 128
    $region29: #{tpu_custom_call.1} parent=1 // pred_fallthru
      _
    // Predicated region
    $region30: #{tpu_custom_call.1} parent=1 // pred_check
      _
    $region31: #{tpu_custom_call.1} parent=1 // pred_check_branch
      %90 = sbr.rel (0) target = $region33
    $region32: #{tpu_custom_call.1} parent=1 // pred_region
      %91 = dma.done [#allocation6], 256
    $region33: #{tpu_custom_call.1} parent=1 // pred_fallthru
      _
    // Predicated region
    $region34: #{tpu_custom_call.1} parent=1 // pred_check
      _
    $region35: #{tpu_custom_call.1} parent=1 // pred_check_branch
      %93 = sbr.rel (0) target = $region37
    $region36: #{tpu_custom_call.1} parent=1 // pred_region
      %94 = dma.done [#allocation6], 1536
    $region37: #{tpu_custom_call.1} parent=1 // pred_fallthru
      _
    // Predicated region
    $region38: #{tpu_custom_call.1} parent=1 // pred_check
      _
    $region39: #{tpu_custom_call.1} parent=1 // pred_check_branch
      %96 = sbr.rel (0) target = $region41
    $region40: #{tpu_custom_call.1} parent=1 // pred_region
      %97 = dma.done [#allocation9], 512
    $region41: #{tpu_custom_call.1} parent=1 // pred_fallthru
      _
    // Predicated region
    $region42: #{tpu_custom_call.1} parent=1 // pred_check
      _
    $region43: #{tpu_custom_call.1} parent=1 // pred_check_branch
      %99 = sbr.rel (0) target = $region45
    $region44: #{tpu_custom_call.1} parent=1 // pred_region
      %100 = dma.done [#allocation9], 256
    $region45: #{tpu_custom_call.1} parent=1 // pred_fallthru
      _
    // Predicated region
    $region46: #{tpu_custom_call.1} parent=1 // pred_check
      _
    $region47: #{tpu_custom_call.1} parent=1 // pred_check_branch
      %102 = sbr.rel (0) target = $region49
    $region48: #{tpu_custom_call.1} parent=1 // pred_region
      %103 = dma.done [#allocation12], 2048
    $region49: #{tpu_custom_call.1} parent=1 // pred_fallthru
      _
    %v104 = vld [vmem:[#allocation11] sm:$0xff]
    %v105 = vld [vmem:[#allocation11 + $0x8] sm:$0xff]
    %v106 = vld [vmem:[#allocation11 + $0x10] sm:$0xff]
    %v107 = vld [vmem:[#allocation11 + $0x18] sm:$0xff]
    %v108 = vld [vmem:[#allocation11 + $0x20] sm:$0xff]
    %v109 = vld [vmem:[#allocation11 + $0x28] sm:$0xff]
    %v110 = vld [vmem:[#allocation11 + $0x30] sm:$0xff]
    %v111 = vld [vmem:[#allocation11 + $0x38] sm:$0xff]
    %v112 = vld [vmem:[#allocation11 + $0x40] sm:$0xff]
    %v113 = vld [vmem:[#allocation11 + $0x48] sm:$0xff]
    %v114 = vld [vmem:[#allocation11 + $0x50] sm:$0xff]
    %v115 = vld [vmem:[#allocation11 + $0x58] sm:$0xff]
    %v116 = vld [vmem:[#allocation11 + $0x60] sm:$0xff]
    %v117 = vld [vmem:[#allocation11 + $0x68] sm:$0xff]
    %v118 = vld [vmem:[#allocation11 + $0x70] sm:$0xff]
    %v119 = vld [vmem:[#allocation11 + $0x78] sm:$0xff]
    %v120 = vld [vmem:[#allocation10 + $0xb] sm:$0x1]
    %v121 = vlaneseq
    %v122 = vshrl.u32 %v121, 7
    %v123 = vsub.s32 0, %v122
    %v124 = vrot.slane %v120, %v123
    %125 = vmatprep.subr.mxu0 0.0
    %126 = vmatpush1.msra.mxu0 %v104
    %127 = vmatprep.subr.mxu0 0.0
    %128 = vmatpush1.msra.mxu0 %v105
    %129 = vmatprep.subr.mxu0 0.0
    %130 = vmatpush1.msra.mxu0 %v106
    %131 = vmatprep.subr.mxu0 0.0
    %132 = vmatpush1.msra.mxu0 %v107
    %133 = vmatprep.subr.mxu0 0.0
    %134 = vmatpush1.msra.mxu0 %v108
    %135 = vmatprep.subr.mxu0 0.0
    %136 = vmatpush1.msra.mxu0 %v109
    %137 = vmatprep.subr.mxu0 0.0
    %138 = vmatpush1.msra.mxu0 %v110
    %139 = vmatprep.subr.mxu0 0.0
    %140 = vmatpush1.msra.mxu0 %v111
    %141 = vmatprep.subr.mxu0 0.0
    %142 = vmatpush1.msra.mxu0 %v112
    %143 = vmatprep.subr.mxu0 0.0
    %144 = vmatpush1.msra.mxu0 %v113
    %145 = vmatprep.subr.mxu0 0.0
    %146 = vmatpush1.msra.mxu0 %v114
    %147 = vmatprep.subr.mxu0 0.0
    %148 = vmatpush1.msra.mxu0 %v115
    %149 = vmatprep.subr.mxu0 0.0
    %150 = vmatpush1.msra.mxu0 %v116
    %151 = vmatprep.subr.mxu0 0.0
    %152 = vmatpush1.msra.mxu0 %v117
    %153 = vmatprep.subr.mxu0 0.0
    %154 = vmatpush1.msra.mxu0 %v118
    %155 = vmatprep.subr.mxu0 0.0
    %156 = vmatpush1.msra.mxu0 %v119
    %157 = vmatprep.subr.mxu0 0.0
    %158 = vmatpush1.msra.mxu0 0.0
    %159 = vmatprep.subr.mxu0 0.0
    %160 = vmatpush1.msra.mxu0 0.0
    %161 = vmatprep.subr.mxu0 0.0
    %162 = vmatpush1.msra.mxu0 0.0
    %163 = vmatprep.subr.mxu0 0.0
    %164 = vmatpush1.msra.mxu0 0.0
    %165 = vmatprep.subr.mxu0 0.0
    %166 = vmatpush1.msra.mxu0 0.0
    %167 = vmatprep.subr.mxu0 0.0
    %168 = vmatpush1.msra.mxu0 0.0
    %169 = vmatprep.subr.mxu0 0.0
    %170 = vmatpush1.msra.mxu0 0.0
    %171 = vmatprep.subr.mxu0 0.0
    %172 = vmatpush1.msra.mxu0 0.0
    %173 = vmatprep.subr.mxu0 0.0
    %174 = vmatpush1.msra.mxu0 0.0
    %175 = vmatprep.subr.mxu0 0.0
    %176 = vmatpush1.msra.mxu0 0.0
    %177 = vmatprep.subr.mxu0 0.0
    %178 = vmatpush1.msra.mxu0 0.0
    %179 = vmatprep.subr.mxu0 0.0
    %180 = vmatpush1.msra.mxu0 0.0
    %181 = vmatprep.subr.mxu0 0.0
    %182 = vmatpush1.msra.mxu0 0.0
    %183 = vmatprep.subr.mxu0 0.0
    %184 = vmatpush1.msra.mxu0 0.0
    %185 = vmatprep.subr.mxu0 0.0
    %186 = vmatpush1.msra.mxu0 0.0
    %187 = vmatprep.subr.mxu0 0.0
    %188 = vmatpush1.msra.mxu0 0.0
    %189 = vmatprep.mubr.f32.mxu0 0.0
    %190 = vmatmul.mubr.f32.gmra.mrb[0].mxu0 1.0
    %v191 = vpop.f32.mrb[0].mxu0
    %v192 = vadd.f32 %v124, %v191
    %v193 = vpop.f32.mrb[0].mxu0
    %194 = vdwg.mxu0
    %195 = vst [vmem:[#allocation13] sm:$0xff] %v192
    %s196 = scalar_lea.vmem [#allocation13], 8
    %197 = vst [vmem:[%s196] sm:$0xff] 1.0
    // Predicated region
    $region50: #{tpu_custom_call.1} parent=1 // pred_check
      _
    $region51: #{tpu_custom_call.1} parent=1 // pred_check_branch
      %199 = sbr.rel (0) target = $region53
    $region52: #{tpu_custom_call.1} parent=1 // pred_region
      %s201 = ssub.s32 256, 256
      %202 = vsyncadd [#allocation4], %s201
      %s203 = sshll.u32 [#allocation13], 4
      %s204 = int_to_ptr.vmem [resolvable:$true] %s203
      %209 = dma.vmem_to_hbm [thread:$0]  %s204, 256, %s6, [#allocation4], 128, 128, 8
    $region53: #{tpu_custom_call.1} parent=1 // pred_fallthru
      _
    // Predicated region
    $region54: #{tpu_custom_call.1} parent=1 // pred_check
      _
    $region55: #{tpu_custom_call.1} parent=1 // pred_check_branch
      %211 = sbr.rel (0) target = $region57
    $region56: #{tpu_custom_call.1} parent=1 // pred_region
      %212 = dma.done [#allocation4], 256
    $region57: #{tpu_custom_call.1} parent=1 // pred_fallthru
      _
    %213 = vsyncpa [#allocation3], 1
    %214 = vsyncpa [#allocation6], 1
    %215 = vsyncpa [#allocation9], 1
    %216 = vsyncpa [#allocation12], 1
    %217 = vsyncpa [#allocation4], 1

</llo_original>
